<compile_context>
chip_gen: v7x
topology: tpu7x:2x2x1
jax: 0.10.0
libtpu: 0.0.40
codegen_flags: <defaults>
</compile_context>

<pallas_src>
import functools
import math

import jax
import jax.numpy as jnp
from jax import lax
from jax.experimental import pallas as pl
from jax.experimental.pallas import tpu as pltpu


# ----------------------------------------------------------------------------- kernel
def _ffn_kernel(x_ref, w1_ref, w2_ref, o_ref, acc_ref, *, activation):
    """One (M-tile, d_ff-tile) step of  out = act(x @ W1^T) @ W2^T.

    x_ref  : (TM, d_model)       activations (native dtype)
    w1_ref : (TF, d_model)       native nn.Linear layout (d_ff, d_model) tile
    w2_ref : (d_model, TF)       native nn.Linear layout (d_model, d_ff) tile
    o_ref  : (TM, d_model)
    acc_ref: (TM, d_model) f32   resident across the d_ff (j, reduction) axis
    """
    j = pl.program_id(1)

    @pl.when(j == 0)
    def _():
        acc_ref[...] = jnp.zeros_like(acc_ref)

    # linear_1 partial: contract d_model (last dim of BOTH operands) == x @ W1^T,
    # weights stay in their native layout, no wrapper transpose.
    h = lax.dot_general(
        x_ref[...], w1_ref[...],
        dimension_numbers=(((1,), (1,)), ((), ())),
        preferred_element_type=jnp.float32)

    # activation (elementwise over d_ff -> exact to apply per d_ff tile).
    if activation == "relu":
        h = jnp.maximum(h, 0.0)
    elif activation == "gelu":
        h = jax.nn.gelu(h, approximate=False)      # matches torch nn.GELU (erf)
    # activation None -> identity

    # nn.Dropout is identity at inference.
    # TODO(synk): training-mode dropout would need pltpu.prng_seed +
    #             pltpu.prng_random_bits masking with 1/(1-p) scaling.

    # linear_2 partial: contract the d_ff tile (last dim of both) == h @ W2^T.
    acc_ref[...] += lax.dot_general(
        h.astype(w2_ref.dtype), w2_ref[...],
        dimension_numbers=(((1,), (1,)), ((), ())),
        preferred_element_type=jnp.float32)

    @pl.when(j == pl.num_programs(1) - 1)
    def _():
        o_ref[...] = acc_ref[...].astype(o_ref.dtype)


# ----------------------------------------------------------------------------- tiling
def _round_up(v, m):
    return ((v + m - 1) // m) * m


def _vmem_capacity_bytes():
    """Per-core VMEM capacity; conservative (v7x: 64 MiB) if the query fails."""
    try:
        info = pltpu.get_tpu_info()
        cap = getattr(info, "vmem_capacity_bytes", None)
        if cap:
            return int(cap)
    except Exception:
        pass
    return 64 << 20


def _choose_tiles(M, d_model, d_ff, x_bytes, w_bytes, vmem_cap):
    """Pick (TM, TF) so the double-buffered working set fits a VMEM budget."""
    budget = int(vmem_cap * 0.70)   # headroom for compiler internal scratch, sems, etc.

    # --- TM candidates: MXU-shaped (multiples of 128), largest first. ---
    if M <= 128:
        tm_candidates = [_round_up(M, 16)]              # decode / tiny-batch: single tile
    else:
        tm_candidates = [t for t in (1024, 512, 256, 128) if t <= _round_up(M, 128)]
        # ~64 MiB-VMEM parts (v7x) have 2 TensorCores per chip: keep >= 2 M-tiles
        # so the 'parallel' axis shards across both cores. Free on 1-TC chips.
        if vmem_cap <= (64 << 20) and M >= 256:
            cap_tm = _round_up((M + 1) // 2, 128)
            tm_candidates = [t for t in tm_candidates if t <= cap_tm] or [128]

    # --- TF candidates: multiples of 256 (full d_ff when small), largest first. ---
    if d_ff <= 256:
        tf_candidates = [d_ff]
    else:
        tf_candidates = [t for t in (2048, 1024, 512, 256) if t <= _round_up(d_ff, 256)]

    def footprint(tm, tf):
        return (2 * tm * d_model * x_bytes        # x tile  (double buffered)
                + 2 * tm * d_model * x_bytes      # out tile
                + 2 * tf * d_model * w_bytes      # W1 tile
                + 2 * d_model * tf * w_bytes      # W2 tile
                + tm * d_model * 4)               # f32 accumulator scratch

    # Prefer big TM first (fewer full weight re-streams from HBM), then big TF
    # (fewer accumulator read-modify-write passes / fewer grid steps).
    for tm in tm_candidates:
        for tf in tf_candidates:
            if footprint(tm, tf) <= budget:
                return tm, tf
    return tm_candidates[-1], tf_candidates[-1]   # smallest combo; vmem_limit gives slack


# ----------------------------------------------------------------------------- wrapper
def feed_forward_block(x, w1, w2, *, activation="relu", compute_dtype=None):
    """x: (..., d_model); w1: (d_ff, d_model); w2: (d_model, d_ff) (native nn.Linear layouts).

    compute_dtype: optionally cast x / weights (e.g. jnp.bfloat16) to feed the MXU
    narrow operands; accumulation stays f32. Returns an array of x's shape.
    """
    orig_shape = x.shape
    w1 = jnp.asarray(w1)
    w2 = jnp.asarray(w2)
    d_ff, d_model = w1.shape
    assert orig_shape[-1] == d_model and w2.shape == (d_model, d_ff)

    M = 1
    for s in orig_shape[:-1]:
        M *= s
    x2 = x.reshape(M, d_model)

    if compute_dtype is not None:
        x2 = x2.astype(compute_dtype)
        w1 = w1.astype(compute_dtype)
        w2 = w2.astype(compute_dtype)

    x_bytes = jnp.dtype(x2.dtype).itemsize
    w_bytes = jnp.dtype(w1.dtype).itemsize

    vmem_cap = _vmem_capacity_bytes()
    TM, TF = _choose_tiles(M, d_model, d_ff, x_bytes, w_bytes, vmem_cap)

    # cdiv-style grid with explicit zero padding (no silent un-tiled fallback).
    M_pad = _round_up(M, TM)
    F_pad = _round_up(d_ff, TF)
    if M_pad != M:
        x2 = jnp.pad(x2, ((0, M_pad - M), (0, 0)))
    if F_pad != d_ff:
        # Zero-padded d_ff slots contribute exactly zero: W2's padded columns are zero.
        w1 = jnp.pad(w1, ((0, F_pad - d_ff), (0, 0)))
        w2 = jnp.pad(w2, ((0, 0), (0, F_pad - d_ff)))

    grid = (M_pad // TM, F_pad // TF)
    kernel = functools.partial(_ffn_kernel, activation=activation)

    # Accurate-ish advisory cost: weights are re-streamed once per M-tile.
    grid_m = grid[0]
    cost = pl.CostEstimate(
        flops=4 * M * d_model * d_ff,
        transcendentals=(M * d_ff) if activation == "gelu" else 0,
        bytes_accessed=(2 * M_pad * d_model * x_bytes                 # x in + out
                        + grid_m * 2 * d_model * F_pad * w_bytes),    # W1 + W2 per M-tile
    )

    out = pl.pallas_call(
        kernel,
        out_shape=jax.ShapeDtypeStruct((M_pad, d_model), x2.dtype),
        grid_spec=pltpu.PrefetchScalarGridSpec(
            num_scalar_prefetch=0,
            grid=grid,
            in_specs=[
                pl.BlockSpec((TM, d_model), lambda i, j: (i, 0)),   # x tile
                pl.BlockSpec((TF, d_model), lambda i, j: (j, 0)),   # W1 tile (native layout)
                pl.BlockSpec((d_model, TF), lambda i, j: (0, j)),   # W2 tile (native layout)
            ],
            out_specs=pl.BlockSpec((TM, d_model), lambda i, j: (i, 0)),
            scratch_shapes=[pltpu.VMEM((TM, d_model), jnp.float32)],
        ),
        compiler_params=pltpu.CompilerParams(
            dimension_semantics=("parallel", "arbitrary"),
            vmem_limit_bytes=int(vmem_cap * 0.85),
        ),
        cost_estimate=cost,
    )(x2, w1, w2)

    out = out[:M]
    return out.reshape(orig_shape)


# ----------------------------------------------------------------------------- demo
def _torch_linear_weight(key, out_features, in_features):
    """Deterministic nn.Linear(bias=False)-style init: U(-1/sqrt(fan_in), 1/sqrt(fan_in))."""
    bound = 1.0 / math.sqrt(in_features)
    return jax.random.uniform(key, (out_features, in_features), jnp.float32,
                              -bound, bound)


if __name__ == "__main__":
    B, S, d_model, d_ff = 2, 8, 32, 64            # small demo shapes
    key = jax.random.PRNGKey(0)
    kx, k1, k2 = jax.random.split(key, 3)

    x = jax.random.normal(kx, (B, S, d_model), jnp.float32)
    w1 = _torch_linear_weight(k1, d_ff, d_model)   # linear_1.weight: (d_ff, d_model)
    w2 = _torch_linear_weight(k2, d_model, d_ff)   # linear_2.weight: (d_model, d_ff)

    # Pure-JAX reference (dropout identity in eval mode).
    ref = jnp.maximum(x @ w1.T, 0.0) @ w2.T

    # f32 path (tight check).
    out = feed_forward_block(x, w1, w2, activation="relu")
    out = jax.block_until_ready(out)
    assert out.shape == ref.shape
    assert jnp.allclose(out, ref, atol=1e-5, rtol=1e-5)

    # bf16 operand path (MXU-friendly), loose check against the f32 reference.
    out_bf16 = feed_forward_block(x, w1, w2, activation="relu",
                                  compute_dtype=jnp.bfloat16)
    out_bf16 = jax.block_until_ready(out_bf16)
    assert jnp.allclose(out_bf16.astype(jnp.float32), ref, atol=5e-2, rtol=5e-2)

    print("KERNEL_OK")
</pallas_src>

<mosaic_0001>
module attributes {stable_mosaic.version = 11 : i64} {
  func.func @_ffn_kernel(%arg0: i32, %arg1: i32, %arg2: memref<16x32xf32, #tpu.memory_space<vmem>>, %arg3: memref<64x32xf32, #tpu.memory_space<vmem>>, %arg4: memref<32x64xf32, #tpu.memory_space<vmem>>, %arg5: memref<16x32xf32, #tpu.memory_space<vmem>>, %arg6: memref<16x32xf32, #tpu.memory_space<vmem>>) attributes {dimension_semantics = [#tpu.dimension_semantics<parallel>, #tpu.dimension_semantics<arbitrary>], iteration_bounds = array<i64: 1, 1>, scalar_prefetch = 0 : i64, scratch_operands = 1 : i64, tpu.core_type = #tpu.core_type<tc>, window_params = [{transform_indices = @transform_0, window_bounds = array<i64: 16, 32>}, {transform_indices = @transform_1, window_bounds = array<i64: 64, 32>}, {transform_indices = @transform_2, window_bounds = array<i64: 32, 64>}, {transform_indices = @transform_3, window_bounds = array<i64: 16, 32>}]} {
    %c0_i32 = arith.constant 0 : i32
    %0 = arith.cmpi eq, %arg1, %c0_i32 : i32
    %1 = arith.extui %0 : i1 to i32
    %c0_i32_0 = arith.constant 0 : i32
    %2 = arith.cmpi ne, %1, %c0_i32_0 : i32
    scf.if %2 {
      %cst_14 = arith.constant 0.000000e+00 : f32
      %16 = vector.broadcast %cst_14 : f32 to vector<16x32xf32>
      %c0_15 = arith.constant 0 : index
      %c0_16 = arith.constant 0 : index
      %17 = vector.load %arg6[%c0_15, %c0_16] : memref<16x32xf32, #tpu.memory_space<vmem>>, vector<16x32xf32>
      tpu.vector_store %arg6[%c0_15, %c0_16], %16 {strides = array<i32>} : memref<16x32xf32, #tpu.memory_space<vmem>>, vector<16x32xf32>,
    } else {
    }
    %c0 = arith.constant 0 : index
    %c0_1 = arith.constant 0 : index
    %3 = vector.load %arg2[%c0, %c0_1] : memref<16x32xf32, #tpu.memory_space<vmem>>, vector<16x32xf32>
    %c0_2 = arith.constant 0 : index
    %c0_3 = arith.constant 0 : index
    %4 = vector.load %arg3[%c0_2, %c0_3] : memref<64x32xf32, #tpu.memory_space<vmem>>, vector<64x32xf32>
    %cst = arith.constant dense<0.000000e+00> : vector<16x64xf32>
    %5 = tpu.matmul %3, %4, %cst {dimension_numbers = #tpu.dot_dimension_numbers<[1], [1], [0], [0], [0, 0, 1, 0], [], []>} : vector<16x32xf32>, vector<64x32xf32>, vector<16x64xf32> -> vector<16x64xf32>
    %cst_4 = arith.constant 0.000000e+00 : f32
    %6 = vector.broadcast %cst_4 : f32 to vector<16x64xf32>
    %7 = arith.maximumf %5, %6 : vector<16x64xf32>
    %c0_5 = arith.constant 0 : index
    %c0_6 = arith.constant 0 : index
    %8 = vector.load %arg6[%c0_5, %c0_6] : memref<16x32xf32, #tpu.memory_space<vmem>>, vector<16x32xf32>
    %c0_7 = arith.constant 0 : index
    %c0_8 = arith.constant 0 : index
    %9 = vector.load %arg4[%c0_7, %c0_8] : memref<32x64xf32, #tpu.memory_space<vmem>>, vector<32x64xf32>
    %cst_9 = arith.constant dense<0.000000e+00> : vector<16x32xf32>
    %10 = tpu.matmul %7, %9, %cst_9 {dimension_numbers = #tpu.dot_dimension_numbers<[1], [1], [0], [0], [0, 0, 1, 0], [], []>} : vector<16x64xf32>, vector<32x64xf32>, vector<16x32xf32> -> vector<16x32xf32>
    %11 = arith.addf %8, %10 : vector<16x32xf32>
    %c0_10 = arith.constant 0 : index
    %c0_11 = arith.constant 0 : index
    %12 = vector.load %arg6[%c0_10, %c0_11] : memref<16x32xf32, #tpu.memory_space<vmem>>, vector<16x32xf32>
    tpu.vector_store %arg6[%c0_10, %c0_11], %11 {strides = array<i32>} : memref<16x32xf32, #tpu.memory_space<vmem>>, vector<16x32xf32>,
    %c0_i32_12 = arith.constant 0 : i32
    %13 = arith.cmpi eq, %arg1, %c0_i32_12 : i32
    %14 = arith.extui %13 : i1 to i32
    %c0_i32_13 = arith.constant 0 : i32
    %15 = arith.cmpi ne, %14, %c0_i32_13 : i32
    scf.if %15 {
      %c0_14 = arith.constant 0 : index
      %c0_15 = arith.constant 0 : index
      %16 = vector.load %arg6[%c0_14, %c0_15] : memref<16x32xf32, #tpu.memory_space<vmem>>, vector<16x32xf32>
      %c0_16 = arith.constant 0 : index
      %c0_17 = arith.constant 0 : index
      %17 = vector.load %arg5[%c0_16, %c0_17] : memref<16x32xf32, #tpu.memory_space<vmem>>, vector<16x32xf32>
      tpu.vector_store %arg5[%c0_16, %c0_17], %16 {strides = array<i32>} : memref<16x32xf32, #tpu.memory_space<vmem>>, vector<16x32xf32>,
    } else {
    }
    return
  }
  func.func @transform_0(%arg0: i32, %arg1: i32) -> (i32, i32) {
    %c0_i32 = arith.constant 0 : i32
    %c0_i32_0 = arith.constant 0 : i32
    return %arg0, %c0_i32 : i32, i32
  }
  func.func @transform_1(%arg0: i32, %arg1: i32) -> (i32, i32) {
    %c0_i32 = arith.constant 0 : i32
    %c0_i32_0 = arith.constant 0 : i32
    return %arg1, %c0_i32 : i32, i32
  }
  func.func @transform_2(%arg0: i32, %arg1: i32) -> (i32, i32) {
    %c0_i32 = arith.constant 0 : i32
    %c0_i32_0 = arith.constant 0 : i32
    return %c0_i32, %arg1 : i32, i32
  }
  func.func @transform_3(%arg0: i32, %arg1: i32) -> (i32, i32) {
    %c0_i32 = arith.constant 0 : i32
    %c0_i32_0 = arith.constant 0 : i32
    return %arg0, %c0_i32 : i32, i32
  }
}

</mosaic_0001>

<llo_original>
// kernel: tpu_custom_call.1
$region0: #{tpu_custom_call.1}
  #allocation0 [shape = 'u32[]', space=smem, size = 0x4, offset = 0x4, fixed_abs, tag = 'smem constant byte address 0x4 - core index']
  #allocation1 [shape = 'u32[144,128]{1,0:T(1,128)}', space=vmem, size = 0x12000, scoped, tag = 'internal scratch']
  #allocation2 [shape = 'f32[16,32]{1,0:T(8,128)}', space=vmem, size = 0x2000, scoped, tag = 'scratch operand']
  %s0 = inlined_call_operand.vmem [shape: f32[16,32], index: 0, kind: input, shape index: {}]
  %s1 = inlined_call_operand.vmem [shape: f32[64,32], index: 1, kind: input, shape index: {}]
  %s2 = inlined_call_operand.vmem [shape: f32[32,64], index: 2, kind: input, shape index: {}]
  %s3 = inlined_call_operand.hbm [shape: f32[16,32], index: 3, kind: output, shape index: {}]
  %s4 = sld [smem:[#allocation0]]
  $region30: #{tpu_custom_call.1} parent=0
    _
  %s6 = ssub.s32 1, %s4
  %s7 = scalar_select 0, %s6, %s4
  $region1: #{tpu_custom_call.1} parent=0
    #allocation3 [shape = 'u8[8192]{0}', space=vmem, size = 0x2000, scoped, tag = 'output window, operand 0, single buffered']
    #allocation4 [shape = 's32[1]{0}', space=sflag, size = 0x4, scoped, tag = 'scoped memory for tpu_custom_call.1']
    %8 = vsyncpa [#allocation4], 0
    // Predicated region
    $region2: #{tpu_custom_call.1} parent=1 // pred_check
      _
    $region3: #{tpu_custom_call.1} parent=1 // pred_check_branch
      %10 = sbr.rel (0) target = $region5
    $region4: #{tpu_custom_call.1} parent=1 // pred_region
      _
    $region5: #{tpu_custom_call.1} parent=1 // pred_fallthru
      _
    // Predicated region
    $region6: #{tpu_custom_call.1} parent=1 // pred_check
      _
    $region7: #{tpu_custom_call.1} parent=1 // pred_check_branch
      %12 = sbr.rel (0) target = $region9
    $region8: #{tpu_custom_call.1} parent=1 // pred_region
      _
    $region9: #{tpu_custom_call.1} parent=1 // pred_fallthru
      _
    // Predicated region
    $region10: #{tpu_custom_call.1} parent=1 // pred_check
      _
    $region11: #{tpu_custom_call.1} parent=1 // pred_check_branch
      %14 = sbr.rel (0) target = $region13
    $region12: #{tpu_custom_call.1} parent=1 // pred_region
      _
    $region13: #{tpu_custom_call.1} parent=1 // pred_fallthru
      _
    %p15 = scmp.eq.s32.totalorder 0, 0
    // Predicated region
    $region14: #{tpu_custom_call.1} parent=1 // pred_check
      %p16 = pneg %p15
    $region15: #{tpu_custom_call.1} parent=1 // pred_check_branch
      %18 = sbr.rel (%p16) target = $region17
    $region16: #{tpu_custom_call.1} parent=1 // pred_region
      %vm19 = vcmask 261120
      %20 = vst.msk [vmem:[#allocation2] sm:$0xff] %vm19, 0.0
      %21 = vst.msk [vmem:[#allocation2 + $0x8] sm:$0xff] %vm19, 0.0
    $region17: #{tpu_custom_call.1} parent=1 // pred_fallthru
      _
    %v22 = vld [vmem:[%s0] sm:$0xff]
    %v23 = vld [vmem:[%s0 + $0x8] sm:$0xff]
    %v24 = vld [vmem:[%s1] sm:$0xff]
    %v25 = vld [vmem:[%s1 + $0x8] sm:$0xff]
    %v26 = vld [vmem:[%s1 + $0x10] sm:$0xff]
    %v27 = vld [vmem:[%s1 + $0x18] sm:$0xff]
    %v28 = vld [vmem:[%s1 + $0x20] sm:$0xff]
    %v29 = vld [vmem:[%s1 + $0x28] sm:$0xff]
    %v30 = vld [vmem:[%s1 + $0x30] sm:$0xff]
    %v31 = vld [vmem:[%s1 + $0x38] sm:$0xff]
    %vm32 = vcmask 261120
    %v34 = vsel %vm32, %v22, 0
    %v37 = vsel %vm32, %v23, 0
    %v40 = vsel %vm32, %v24, 0
    %v43 = vsel %vm32, %v25, 0
    %v46 = vsel %vm32, %v26, 0
    %v49 = vsel %vm32, %v27, 0
    %v52 = vsel %vm32, %v28, 0
    %v55 = vsel %vm32, %v29, 0
    %v58 = vsel %vm32, %v30, 0
    %v61 = vsel %vm32, %v31, 0
    %63 = vmatprep.subr.mxu0 0.0
    %64 = vmatpush1.xpose.msra.mxu0 %v40
    %65 = vmatprep.subr.mxu0 0.0
    %66 = vmatpush1.xpose.msra.mxu0 %v43
    %67 = vmatprep.subr.mxu0 0.0
    %68 = vmatpush1.xpose.msra.mxu0 %v46
    %69 = vmatprep.subr.mxu0 0.0
    %70 = vmatpush1.xpose.msra.mxu0 %v49
    %71 = vmatprep.subr.mxu0 0.0
    %72 = vmatpush1.xpose.msra.mxu0 %v52
    %73 = vmatprep.subr.mxu0 0.0
    %74 = vmatpush1.xpose.msra.mxu0 %v55
    %75 = vmatprep.subr.mxu0 0.0
    %76 = vmatpush1.xpose.msra.mxu0 %v58
    %77 = vmatprep.subr.mxu0 0.0
    %78 = vmatpush1.xpose.msra.mxu0 %v61
    %79 = vmatprep.subr.mxu0 0.0
    %80 = vmatpush1.xpose.msra.mxu0 0.0
    %81 = vmatprep.subr.mxu0 0.0
    %82 = vmatpush1.xpose.msra.mxu0 0.0
    %83 = vmatprep.subr.mxu0 0.0
    %84 = vmatpush1.xpose.msra.mxu0 0.0
    %85 = vmatprep.subr.mxu0 0.0
    %86 = vmatpush1.xpose.msra.mxu0 0.0
    %87 = vmatprep.subr.mxu0 0.0
    %88 = vmatpush1.xpose.msra.mxu0 0.0
    %89 = vmatprep.subr.mxu0 0.0
    %90 = vmatpush1.xpose.msra.mxu0 0.0
    %91 = vmatprep.subr.mxu0 0.0
    %92 = vmatpush1.xpose.msra.mxu0 0.0
    %93 = vmatprep.subr.mxu0 0.0
    %94 = vmatpush1.xpose.msra.mxu0 0.0
    %95 = vmatprep.subr.mxu0 0.0
    %96 = vmatpush1.xpose.msra.mxu0 0.0
    %97 = vmatprep.subr.mxu0 0.0
    %98 = vmatpush1.xpose.msra.mxu0 0.0
    %99 = vmatprep.subr.mxu0 0.0
    %100 = vmatpush1.xpose.msra.mxu0 0.0
    %101 = vmatprep.subr.mxu0 0.0
    %102 = vmatpush1.xpose.msra.mxu0 0.0
    %103 = vmatprep.subr.mxu0 0.0
    %104 = vmatpush1.xpose.msra.mxu0 0.0
    %105 = vmatprep.subr.mxu0 0.0
    %106 = vmatpush1.xpose.msra.mxu0 0.0
    %107 = vmatprep.subr.mxu0 0.0
    %108 = vmatpush1.xpose.msra.mxu0 0.0
    %109 = vmatprep.subr.mxu0 0.0
    %110 = vmatpush1.xpose.msra.mxu0 0.0
    %111 = vmatprep.subr.mxu0 0.0
    %112 = vmatpush1.xpose.msra.mxu0 0.0
    %113 = vmatprep.subr.mxu0 0.0
    %114 = vmatpush1.xpose.msra.mxu0 0.0
    %115 = vmatprep.subr.mxu0 0.0
    %116 = vmatpush1.xpose.msra.mxu0 0.0
    %117 = vmatprep.subr.mxu0 0.0
    %118 = vmatpush1.xpose.msra.mxu0 0.0
    %119 = vmatprep.subr.mxu0 0.0
    %120 = vmatpush1.xpose.msra.mxu0 0.0
    %121 = vmatprep.subr.mxu0 0.0
    %122 = vmatpush1.xpose.msra.mxu0 0.0
    %123 = vmatprep.subr.mxu0 0.0
    %124 = vmatpush1.xpose.msra.mxu0 0.0
    %125 = vmatprep.subr.mxu0 0.0
    %126 = vmatpush1.xpose.msra.mxu0 0.0
    %127 = vmatprep.mubr.f32.mxu0 0.0
    %128 = vmatmul.mubr.f32.gmra.mrb[0].mxu0 %v34
    %v129 = vpop.f32.mrb[0].mxu0
    %v130 = vadd.f32 0.0, %v129
    %v131 = vpop.f32.mrb[0].mxu0
    %132 = vmatprep.mubr.f32.mxu0 0.0
    %133 = vmatmul.mubr.f32.gmra.mrb[0].mxu0 %v37
    %v134 = vpop.f32.mrb[0].mxu0
    %v135 = vadd.f32 0.0, %v134
    %v136 = vpop.f32.mrb[0].mxu0
    %137 = vdwg.mxu0
    %v138 = vmax.f32 %v130, 0.0
    %v139 = vmax.f32 %v135, 0.0
    %v140 = vld [vmem:[#allocation2] sm:$0xff]
    %v141 = vld [vmem:[#allocation2 + $0x8] sm:$0xff]
    %v142 = vld [vmem:[%s2] sm:$0xff]
    %v143 = vld [vmem:[%s2 + $0x8] sm:$0xff]
    %v144 = vld [vmem:[%s2 + $0x10] sm:$0xff]
    %v145 = vld [vmem:[%s2 + $0x18] sm:$0xff]
    %vm146 = vcmask 523264
    %v148 = vsel %vm146, %v138, 0
    %v151 = vsel %vm146, %v139, 0
    %v154 = vsel %vm146, %v142, 0
    %v157 = vsel %vm146, %v143, 0
    %v160 = vsel %vm146, %v144, 0
    %v163 = vsel %vm146, %v145, 0
    %165 = vmatprep.subr.mxu0 0.0
    %166 = vmatpush1.xpose.msra.mxu0 %v154
    %167 = vmatprep.subr.mxu0 0.0
    %168 = vmatpush1.xpose.msra.mxu0 %v157
    %169 = vmatprep.subr.mxu0 0.0
    %170 = vmatpush1.xpose.msra.mxu0 %v160
    %171 = vmatprep.subr.mxu0 0.0
    %172 = vmatpush1.xpose.msra.mxu0 %v163
    %173 = vmatprep.subr.mxu0 0.0
    %174 = vmatpush1.xpose.msra.mxu0 0.0
    %175 = vmatprep.subr.mxu0 0.0
    %176 = vmatpush1.xpose.msra.mxu0 0.0
    %177 = vmatprep.subr.mxu0 0.0
    %178 = vmatpush1.xpose.msra.mxu0 0.0
    %179 = vmatprep.subr.mxu0 0.0
    %180 = vmatpush1.xpose.msra.mxu0 0.0
    %181 = vmatprep.subr.mxu0 0.0
    %182 = vmatpush1.xpose.msra.mxu0 0.0
    %183 = vmatprep.subr.mxu0 0.0
    %184 = vmatpush1.xpose.msra.mxu0 0.0
    %185 = vmatprep.subr.mxu0 0.0
    %186 = vmatpush1.xpose.msra.mxu0 0.0
    %187 = vmatprep.subr.mxu0 0.0
    %188 = vmatpush1.xpose.msra.mxu0 0.0
    %189 = vmatprep.subr.mxu0 0.0
    %190 = vmatpush1.xpose.msra.mxu0 0.0
    %191 = vmatprep.subr.mxu0 0.0
    %192 = vmatpush1.xpose.msra.mxu0 0.0
    %193 = vmatprep.subr.mxu0 0.0
    %194 = vmatpush1.xpose.msra.mxu0 0.0
    %195 = vmatprep.subr.mxu0 0.0
    %196 = vmatpush1.xpose.msra.mxu0 0.0
    %197 = vmatprep.subr.mxu0 0.0
    %198 = vmatpush1.xpose.msra.mxu0 0.0
    %199 = vmatprep.subr.mxu0 0.0
    %200 = vmatpush1.xpose.msra.mxu0 0.0
    %201 = vmatprep.subr.mxu0 0.0
    %202 = vmatpush1.xpose.msra.mxu0 0.0
    %203 = vmatprep.subr.mxu0 0.0
    %204 = vmatpush1.xpose.msra.mxu0 0.0
    %205 = vmatprep.subr.mxu0 0.0
    %206 = vmatpush1.xpose.msra.mxu0 0.0
    %207 = vmatprep.subr.mxu0 0.0
    %208 = vmatpush1.xpose.msra.mxu0 0.0
    %209 = vmatprep.subr.mxu0 0.0
    %210 = vmatpush1.xpose.msra.mxu0 0.0
    %211 = vmatprep.subr.mxu0 0.0
    %212 = vmatpush1.xpose.msra.mxu0 0.0
    %213 = vmatprep.subr.mxu0 0.0
    %214 = vmatpush1.xpose.msra.mxu0 0.0
    %215 = vmatprep.subr.mxu0 0.0
    %216 = vmatpush1.xpose.msra.mxu0 0.0
    %217 = vmatprep.subr.mxu0 0.0
    %218 = vmatpush1.xpose.msra.mxu0 0.0
    %219 = vmatprep.subr.mxu0 0.0
    %220 = vmatpush1.xpose.msra.mxu0 0.0
    %221 = vmatprep.subr.mxu0 0.0
    %222 = vmatpush1.xpose.msra.mxu0 0.0
    %223 = vmatprep.subr.mxu0 0.0
    %224 = vmatpush1.xpose.msra.mxu0 0.0
    %225 = vmatprep.subr.mxu0 0.0
    %226 = vmatpush1.xpose.msra.mxu0 0.0
    %227 = vmatprep.subr.mxu0 0.0
    %228 = vmatpush1.xpose.msra.mxu0 0.0
    %229 = vmatprep.mubr.f32.mxu0 0.0
    %230 = vmatmul.mubr.f32.gmra.mrb[0].mxu0 %v148
    %v231 = vpop.f32.mrb[0].mxu0
    %v232 = vadd.f32 0.0, %v231
    %v233 = vpop.f32.mrb[0].mxu0
    %234 = vmatprep.mubr.f32.mxu0 0.0
    %235 = vmatmul.mubr.f32.gmra.mrb[0].mxu0 %v151
    %v236 = vpop.f32.mrb[0].mxu0
    %v237 = vadd.f32 0.0, %v236
    %v238 = vpop.f32.mrb[0].mxu0
    %239 = vdwg.mxu0
    %v240 = vadd.f32 %v140, %v232
    %v241 = vadd.f32 %v141, %v237
    %242 = vst.msk [vmem:[#allocation2] sm:$0xff] %vm32, %v240
    %243 = vst.msk [vmem:[#allocation2 + $0x8] sm:$0xff] %vm32, %v241
    // Predicated region
    $region18: #{tpu_custom_call.1} parent=1 // pred_check
      %p244 = pneg %p15
    $region19: #{tpu_custom_call.1} parent=1 // pred_check_branch
      %246 = sbr.rel (%p244) target = $region21
    $region20: #{tpu_custom_call.1} parent=1 // pred_region
      %v247 = vld [vmem:[#allocation2] sm:$0xff]
      %v248 = vld [vmem:[#allocation2 + $0x8] sm:$0xff]
      %249 = vst.msk [vmem:[#allocation3] sm:$0xff] %vm32, %v247
      %250 = vst.msk [vmem:[#allocation3 + $0x8] sm:$0xff] %vm32, %v248
    $region21: #{tpu_custom_call.1} parent=1 // pred_fallthru
      _
    // Predicated region
    $region22: #{tpu_custom_call.1} parent=1 // pred_check
      _
    $region23: #{tpu_custom_call.1} parent=1 // pred_check_branch
      %252 = sbr.rel (0) target = $region25
    $region24: #{tpu_custom_call.1} parent=1 // pred_region
      %s254 = ssub.s32 256, 256
      %255 = vsyncadd [#allocation4], %s254
      %s256 = sshll.u32 [#allocation3], 4
      %s257 = int_to_ptr.vmem [resolvable:$true] %s256
      %262 = dma.vmem_to_hbm [thread:$0]  %s257, 256, %s3, [#allocation4], 128, 128, 8
    $region25: #{tpu_custom_call.1} parent=1 // pred_fallthru
      _
    // Predicated region
    $region26: #{tpu_custom_call.1} parent=1 // pred_check
      _
    $region27: #{tpu_custom_call.1} parent=1 // pred_check_branch
      %264 = sbr.rel (0) target = $region29
    $region28: #{tpu_custom_call.1} parent=1 // pred_region
      %265 = dma.done [#allocation4], 256
    $region29: #{tpu_custom_call.1} parent=1 // pred_fallthru
      _
    %266 = vsyncpa [#allocation4], 1

</llo_original>
